<compile_context>
chip_gen: v7x
topology: tpu7x:2x2x1
jax: 0.10.0
libtpu: 0.0.40
codegen_flags: <defaults>
</compile_context>

<pallas_src>
import functools

import jax
import jax.numpy as jnp
from jax.experimental import pallas as pl
from jax.experimental.pallas import tpu as pltpu


def _cnn_kernel(x_ref, w_ref, b_ref, o_ref, *, tb, l_blk, l_out, k, c_in,
                c_out_pad):
    # x_ref: (tb, l_blk + k - 1, c_in) bf16  -- raw zero-padded input block
    # w_ref: (k, c_in, c_out_pad)      bf16  -- per-tap weight slices
    # b_ref: (1, c_out_pad)            f32
    # o_ref: (tb, c_out_pad)           f32
    x = x_ref[...]

    # Convolution as k statically-unrolled MXU matmuls (K = c_in), f32 acc.
    acc = jnp.zeros((tb * l_blk, c_out_pad), jnp.float32)
    for j in range(k):
        xj = x[:, j:j + l_blk, :].reshape(tb * l_blk, c_in)
        acc = acc + jnp.dot(xj, w_ref[j], preferred_element_type=jnp.float32)

    acc = acc.reshape(tb, l_blk, c_out_pad)

    # Mask the alignment-padding conv positions (t >= l_out) before the max.
    if l_blk != l_out:
        t = jax.lax.broadcasted_iota(jnp.int32, (1, l_blk, 1), 1)
        acc = jnp.where(t < l_out, acc, -jnp.inf)

    # Max over time: XLU sublane reduce on the (tile-aligned) l_blk axis.
    m = jnp.max(acc, axis=1)                                   # (tb, c_out_pad)

    # Bias + ReLU after the max: exact (monotone per-channel transform),
    # and runs on a (tb, c_out_pad) tile instead of (tb*l_blk, c_out_pad).
    o_ref[...] = jnp.maximum(m + b_ref[...], 0.0)


def cnn_forward(x, weight, bias, pad=1, tb=None):
    """x: (B, C_in, L) f32; weight: (C_out, C_in, K); bias: (C_out,) -> (B, C_out)."""
    B, c_in, L = x.shape
    c_out, c_in_w, k = weight.shape
    assert c_in == c_in_w
    l_out = L + 2 * pad - k + 1
    assert l_out >= 1

    # number of conv output positions computed in-kernel: sublane-aligned
    l_blk = ((l_out + 7) // 8) * 8
    l_align = l_blk + k - 1          # time steps of raw input needed per block

    # ---- wrapper glue: time-major / channel-last layout, ONE bf16 cast ------
    # (minimum HBM bytes: no k-expanded im2col is ever written to HBM)
    x_t = jnp.transpose(x, (0, 2, 1)).astype(jnp.bfloat16)      # (B, L, c_in)
    # front: Conv1d zero padding; back: Conv1d padding + alignment extra zeros
    x_t = jnp.pad(x_t, ((0, 0), (pad, l_align - L - pad), (0, 0)))

    # ---- batch tiling: many words per grid step ------------------------------
    if tb is None:
        # target ~2-4K matmul rows per step to amortize per-step overhead
        tb = max(1, min(B, pl.cdiv(2048, l_blk)))
    tb = min(tb, B)
    if tb < B:
        tb = max(8, (tb // 8) * 8)       # keep the (tb, c_out_pad) out block aligned
        n_steps = pl.cdiv(B, tb)
        # v7x megacore: prefer an even number of grid steps on the parallel axis
        if n_steps > 1 and n_steps % 2 == 1:
            tb_alt = max(8, ((pl.cdiv(B, n_steps + 1) + 7) // 8) * 8)
            if 0 < tb_alt < B and pl.cdiv(B, tb_alt) % 2 == 0:
                tb = tb_alt
    if tb >= B:
        tb = B                           # single step: full-extent blocks
    n_steps = pl.cdiv(B, tb)
    b_padded = n_steps * tb
    if b_padded != B:
        x_t = jnp.pad(x_t, ((0, b_padded - B), (0, 0), (0, 0)))

    # ---- weights / bias: lane-dense (128-multiple) output channels ----------
    c_out_pad = ((c_out + 127) // 128) * 128
    # per-tap slices: w_taps[j, c, o] = weight[o, c, j]
    w_taps = jnp.transpose(weight, (2, 1, 0)).astype(jnp.bfloat16)  # (k, c_in, c_out)
    if c_out_pad != c_out:
        w_taps = jnp.pad(w_taps, ((0, 0), (0, 0), (0, c_out_pad - c_out)))
    bias2d = bias.reshape(1, c_out).astype(jnp.float32)
    if c_out_pad != c_out:
        bias2d = jnp.pad(bias2d, ((0, 0), (0, c_out_pad - c_out)))

    kernel = functools.partial(
        _cnn_kernel, tb=tb, l_blk=l_blk, l_out=l_out, k=k, c_in=c_in,
        c_out_pad=c_out_pad)

    out = pl.pallas_call(
        kernel,
        out_shape=jax.ShapeDtypeStruct((b_padded, c_out_pad), jnp.float32),
        grid_spec=pltpu.PrefetchScalarGridSpec(
            num_scalar_prefetch=0,
            grid=(n_steps,),
            in_specs=[
                # raw bf16 input: tb words x full (padded) time x channels
                pl.BlockSpec((tb, l_align, c_in), lambda i: (i, 0, 0)),
                # weights / bias: constant index_map -> VMEM-resident across grid
                pl.BlockSpec((k, c_in, c_out_pad), lambda i: (0, 0, 0)),
                pl.BlockSpec((1, c_out_pad), lambda i: (0, 0)),
            ],
            out_specs=pl.BlockSpec((tb, c_out_pad), lambda i: (i, 0)),
        ),
        compiler_params=pltpu.CompilerParams(
            dimension_semantics=("parallel",)),   # megacore-shard batch on v7x
    )(x_t, w_taps, bias2d)
    return out[:B, :c_out]


if __name__ == "__main__":
    key = jax.random.PRNGKey(0)
    k_x, k_w, k_b = jax.random.split(key, 3)

    B, c_in, L = 2, 4, 16      # (batch, e_char, max_word_len)
    c_out, ksz, pad = 8, 5, 1  # (e_word, kernel_size, padding)

    x = jax.random.normal(k_x, (B, c_in, L), dtype=jnp.float32)
    weight = jax.random.normal(k_w, (c_out, c_in, ksz), dtype=jnp.float32) * 0.1
    bias = jax.random.normal(k_b, (c_out,), dtype=jnp.float32) * 0.1

    out = cnn_forward(x, weight, bias, pad=pad)
    jax.block_until_ready(out)

    # plain-JAX reference with the same bf16 operand rounding (f32 accumulation)
    x_r = x.astype(jnp.bfloat16).astype(jnp.float32)
    w_r = weight.astype(jnp.bfloat16).astype(jnp.float32)
    x_padr = jnp.pad(x_r, ((0, 0), (0, 0), (pad, pad)))
    l_out = L + 2 * pad - ksz + 1
    conv = sum(
        jnp.einsum("oc,bcl->bol", w_r[:, :, j], x_padr[:, :, j:j + l_out])
        for j in range(ksz)
    ) + bias[None, :, None]
    ref = jnp.max(jnp.maximum(conv, 0.0), axis=-1)
    assert out.shape == (B, c_out)
    assert jnp.allclose(out, ref, atol=1e-3, rtol=1e-3), "mismatch vs reference"

    print("KERNEL_OK")
</pallas_src>

<mosaic_0001>
module attributes {stable_mosaic.version = 11 : i64} {
  func.func @_cnn_kernel(%arg0: i32, %arg1: memref<2x20x4xbf16, #tpu.memory_space<vmem>>, %arg2: memref<5x4x128xbf16, #tpu.memory_space<vmem>>, %arg3: memref<1x128xf32, #tpu.memory_space<vmem>>, %arg4: memref<2x128xf32, #tpu.memory_space<vmem>>) attributes {dimension_semantics = [#tpu.dimension_semantics<parallel>], iteration_bounds = array<i64: 1>, scalar_prefetch = 0 : i64, scratch_operands = 0 : i64, tpu.core_type = #tpu.core_type<tc>, window_params = [{transform_indices = @transform_0, window_bounds = array<i64: 2, 20, 4>}, {pipeline_mode = #tpu.pipeline_mode<synchronous>, transform_indices = @transform_1, window_bounds = array<i64: 5, 4, 128>}, {pipeline_mode = #tpu.pipeline_mode<synchronous>, transform_indices = @transform_2, window_bounds = array<i64: 1, 128>}, {transform_indices = @transform_3, window_bounds = array<i64: 2, 128>}]} {
    %c0 = arith.constant 0 : index
    %c0_0 = arith.constant 0 : index
    %c0_1 = arith.constant 0 : index
    %0 = vector.load %arg1[%c0, %c0_0, %c0_1] : memref<2x20x4xbf16, #tpu.memory_space<vmem>>, vector<2x20x4xbf16>
    %cst = arith.constant 0.000000e+00 : f32
    %1 = vector.broadcast %cst : f32 to vector<32x128xf32>
    %2 = vector.extract_strided_slice %0 {offsets = [0, 0, 0], sizes = [2, 16, 4], strides = [1, 1, 1]} : vector<2x20x4xbf16> to vector<2x16x4xbf16>
    %3 = vector.shape_cast %2 : vector<2x16x4xbf16> to vector<32x4xbf16>
    %c0_2 = arith.constant 0 : index
    %c0_3 = arith.constant 0 : index
    %c0_4 = arith.constant 0 : index
    %4 = vector.load %arg2[%c0_2, %c0_3, %c0_4] : memref<5x4x128xbf16, #tpu.memory_space<vmem>>, vector<1x4x128xbf16>
    %5 = vector.shape_cast %4 : vector<1x4x128xbf16> to vector<4x128xbf16>
    %cst_5 = arith.constant dense<0.000000e+00> : vector<32x128xf32>
    %6 = tpu.matmul %3, %5, %cst_5 {dimension_numbers = #tpu.dot_dimension_numbers<[1], [0], [0], [1], [0, 0, 1, 1], [], []>} : vector<32x4xbf16>, vector<4x128xbf16>, vector<32x128xf32> -> vector<32x128xf32>
    %7 = arith.addf %1, %6 : vector<32x128xf32>
    %8 = vector.extract_strided_slice %0 {offsets = [0, 1, 0], sizes = [2, 16, 4], strides = [1, 1, 1]} : vector<2x20x4xbf16> to vector<2x16x4xbf16>
    %9 = vector.shape_cast %8 : vector<2x16x4xbf16> to vector<32x4xbf16>
    %c1 = arith.constant 1 : index
    %c0_6 = arith.constant 0 : index
    %c0_7 = arith.constant 0 : index
    %10 = vector.load %arg2[%c1, %c0_6, %c0_7] : memref<5x4x128xbf16, #tpu.memory_space<vmem>>, vector<1x4x128xbf16>
    %11 = vector.shape_cast %10 : vector<1x4x128xbf16> to vector<4x128xbf16>
    %cst_8 = arith.constant dense<0.000000e+00> : vector<32x128xf32>
    %12 = tpu.matmul %9, %11, %cst_8 {dimension_numbers = #tpu.dot_dimension_numbers<[1], [0], [0], [1], [0, 0, 1, 1], [], []>} : vector<32x4xbf16>, vector<4x128xbf16>, vector<32x128xf32> -> vector<32x128xf32>
    %13 = arith.addf %7, %12 : vector<32x128xf32>
    %14 = vector.extract_strided_slice %0 {offsets = [0, 2, 0], sizes = [2, 16, 4], strides = [1, 1, 1]} : vector<2x20x4xbf16> to vector<2x16x4xbf16>
    %15 = vector.shape_cast %14 : vector<2x16x4xbf16> to vector<32x4xbf16>
    %c2 = arith.constant 2 : index
    %c0_9 = arith.constant 0 : index
    %c0_10 = arith.constant 0 : index
    %16 = vector.load %arg2[%c2, %c0_9, %c0_10] : memref<5x4x128xbf16, #tpu.memory_space<vmem>>, vector<1x4x128xbf16>
    %17 = vector.shape_cast %16 : vector<1x4x128xbf16> to vector<4x128xbf16>
    %cst_11 = arith.constant dense<0.000000e+00> : vector<32x128xf32>
    %18 = tpu.matmul %15, %17, %cst_11 {dimension_numbers = #tpu.dot_dimension_numbers<[1], [0], [0], [1], [0, 0, 1, 1], [], []>} : vector<32x4xbf16>, vector<4x128xbf16>, vector<32x128xf32> -> vector<32x128xf32>
    %19 = arith.addf %13, %18 : vector<32x128xf32>
    %20 = vector.extract_strided_slice %0 {offsets = [0, 3, 0], sizes = [2, 16, 4], strides = [1, 1, 1]} : vector<2x20x4xbf16> to vector<2x16x4xbf16>
    %21 = vector.shape_cast %20 : vector<2x16x4xbf16> to vector<32x4xbf16>
    %c3 = arith.constant 3 : index
    %c0_12 = arith.constant 0 : index
    %c0_13 = arith.constant 0 : index
    %22 = vector.load %arg2[%c3, %c0_12, %c0_13] : memref<5x4x128xbf16, #tpu.memory_space<vmem>>, vector<1x4x128xbf16>
    %23 = vector.shape_cast %22 : vector<1x4x128xbf16> to vector<4x128xbf16>
    %cst_14 = arith.constant dense<0.000000e+00> : vector<32x128xf32>
    %24 = tpu.matmul %21, %23, %cst_14 {dimension_numbers = #tpu.dot_dimension_numbers<[1], [0], [0], [1], [0, 0, 1, 1], [], []>} : vector<32x4xbf16>, vector<4x128xbf16>, vector<32x128xf32> -> vector<32x128xf32>
    %25 = arith.addf %19, %24 : vector<32x128xf32>
    %26 = vector.extract_strided_slice %0 {offsets = [0, 4, 0], sizes = [2, 16, 4], strides = [1, 1, 1]} : vector<2x20x4xbf16> to vector<2x16x4xbf16>
    %27 = vector.shape_cast %26 : vector<2x16x4xbf16> to vector<32x4xbf16>
    %c4 = arith.constant 4 : index
    %c0_15 = arith.constant 0 : index
    %c0_16 = arith.constant 0 : index
    %28 = vector.load %arg2[%c4, %c0_15, %c0_16] : memref<5x4x128xbf16, #tpu.memory_space<vmem>>, vector<1x4x128xbf16>
    %29 = vector.shape_cast %28 : vector<1x4x128xbf16> to vector<4x128xbf16>
    %cst_17 = arith.constant dense<0.000000e+00> : vector<32x128xf32>
    %30 = tpu.matmul %27, %29, %cst_17 {dimension_numbers = #tpu.dot_dimension_numbers<[1], [0], [0], [1], [0, 0, 1, 1], [], []>} : vector<32x4xbf16>, vector<4x128xbf16>, vector<32x128xf32> -> vector<32x128xf32>
    %31 = arith.addf %25, %30 : vector<32x128xf32>
    %32 = vector.shape_cast %31 : vector<32x128xf32> to vector<2x16x128xf32>
    %33 = tpu.iota {dimensions = array<i32: 1>} : vector<1x16x1xi32>
    %c14_i32 = arith.constant 14 : i32
    %34 = vector.broadcast %c14_i32 : i32 to vector<1x16x1xi32>
    %35 = arith.cmpi slt, %33, %34 : vector<1x16x1xi32>
    %cst_18 = arith.constant 0xFF800000 : f32
    %36 = vector.shape_cast %35 : vector<1x16x1xi1> to vector<1x16x1xi1>
    %37 = vector.broadcast %36 : vector<1x16x1xi1> to vector<2x16x128xi1>
    %38 = vector.broadcast %cst_18 : f32 to vector<2x16x128xf32>
    %39 = arith.select %37, %32, %38 : vector<2x16x128xi1>, vector<2x16x128xf32>
    %cst_19 = arith.constant dense<0xFF800000> : vector<2x128xf32>
    %40 = vector.multi_reduction <maximumf>, %39, %cst_19 [1] : vector<2x16x128xf32> to vector<2x128xf32>
    %c0_20 = arith.constant 0 : index
    %c0_21 = arith.constant 0 : index
    %41 = vector.load %arg3[%c0_20, %c0_21] : memref<1x128xf32, #tpu.memory_space<vmem>>, vector<1x128xf32>
    %42 = vector.broadcast %41 : vector<1x128xf32> to vector<2x128xf32>
    %43 = arith.addf %40, %42 : vector<2x128xf32>
    %cst_22 = arith.constant 0.000000e+00 : f32
    %44 = vector.broadcast %cst_22 : f32 to vector<2x128xf32>
    %45 = arith.maximumf %43, %44 : vector<2x128xf32>
    %c0_23 = arith.constant 0 : index
    %c0_24 = arith.constant 0 : index
    %46 = vector.load %arg4[%c0_23, %c0_24] : memref<2x128xf32, #tpu.memory_space<vmem>>, vector<2x128xf32>
    tpu.vector_store %arg4[%c0_23, %c0_24], %45 {strides = array<i32>} : memref<2x128xf32, #tpu.memory_space<vmem>>, vector<2x128xf32>,
    return
  }
  func.func @transform_0(%arg0: i32) -> (i32, i32, i32) {
    %c0_i32 = arith.constant 0 : i32
    %c0_i32_0 = arith.constant 0 : i32
    %c0_i32_1 = arith.constant 0 : i32
    return %arg0, %c0_i32, %c0_i32_0 : i32, i32, i32
  }
  func.func @transform_1(%arg0: i32) -> (i32, i32, i32) {
    %c0_i32 = arith.constant 0 : i32
    %c0_i32_0 = arith.constant 0 : i32
    %c0_i32_1 = arith.constant 0 : i32
    %c0_i32_2 = arith.constant 0 : i32
    return %c0_i32, %c0_i32_0, %c0_i32_1 : i32, i32, i32
  }
  func.func @transform_2(%arg0: i32) -> (i32, i32) {
    %c0_i32 = arith.constant 0 : i32
    %c0_i32_0 = arith.constant 0 : i32
    %c0_i32_1 = arith.constant 0 : i32
    return %c0_i32, %c0_i32_0 : i32, i32
  }
  func.func @transform_3(%arg0: i32) -> (i32, i32) {
    %c0_i32 = arith.constant 0 : i32
    %c0_i32_0 = arith.constant 0 : i32
    return %arg0, %c0_i32 : i32, i32
  }
}

</mosaic_0001>

<llo_original>
// kernel: tpu_custom_call.1
$region0: #{tpu_custom_call.1}
  #allocation0 [shape = 'u32[]', space=smem, size = 0x4, offset = 0x4, fixed_abs, tag = 'smem constant byte address 0x4 - core index']
  #allocation1 [shape = 'u32[144,128]{1,0:T(1,128)}', space=vmem, size = 0x12000, scoped, tag = 'internal scratch']
  %s0 = inlined_call_operand.vmem [shape: bf16[2,20,4], index: 0, kind: input, shape index: {}]
  %s1 = inlined_call_operand.vmem [shape: bf16[5,4,128], index: 1, kind: input, shape index: {}]
  %s2 = inlined_call_operand.vmem [shape: f32[1,128], index: 2, kind: input, shape index: {}]
  %s3 = inlined_call_operand.hbm [shape: f32[2,128], index: 3, kind: output, shape index: {}]
  %s4 = sld [smem:[#allocation0]]
  $region22: #{tpu_custom_call.1} parent=0
    _
  %s6 = ssub.s32 1, %s4
  %s7 = scalar_select 0, %s6, %s4
  $region1: #{tpu_custom_call.1} parent=0
    #allocation2 [shape = 'u8[1024]{0}', space=vmem, size = 0x400, scoped, tag = 'output window, operand 0, single buffered']
    #allocation3 [shape = 's32[1]{0}', space=sflag, size = 0x4, scoped, tag = 'scoped memory for tpu_custom_call.1']
    %8 = vsyncpa [#allocation3], 0
    // Predicated region
    $region2: #{tpu_custom_call.1} parent=1 // pred_check
      _
    $region3: #{tpu_custom_call.1} parent=1 // pred_check_branch
      %10 = sbr.rel (0) target = $region5
    $region4: #{tpu_custom_call.1} parent=1 // pred_region
      _
    $region5: #{tpu_custom_call.1} parent=1 // pred_fallthru
      _
    // Predicated region
    $region6: #{tpu_custom_call.1} parent=1 // pred_check
      _
    $region7: #{tpu_custom_call.1} parent=1 // pred_check_branch
      %12 = sbr.rel (0) target = $region9
    $region8: #{tpu_custom_call.1} parent=1 // pred_region
      _
    $region9: #{tpu_custom_call.1} parent=1 // pred_fallthru
      _
    // Predicated region
    $region10: #{tpu_custom_call.1} parent=1 // pred_check
      _
    $region11: #{tpu_custom_call.1} parent=1 // pred_check_branch
      %14 = sbr.rel (0) target = $region13
    $region12: #{tpu_custom_call.1} parent=1 // pred_region
      _
    $region13: #{tpu_custom_call.1} parent=1 // pred_fallthru
      _
    %v16 = vld [vmem:[%s0] sm:$0xf]
    %v17 = vld [vmem:[%s0 + $0x4] sm:$0xf]
    %v18 = vld [vmem:[%s0 + $0x8] sm:$0x3]
    %v19 = vld [vmem:[%s0 + $0xc] sm:$0xf]
    %v20 = vld [vmem:[%s0 + $0x10] sm:$0xf]
    %v21 = vld [vmem:[%s0 + $0x14] sm:$0x3]
    %v22 = vld [vmem:[%s1] sm:$0x3]
    %vm23 = vsmask.f32 3328
    %vm24 = vsmask.f32 7440
    %vm25 = vmor %vm23, %vm24
    %v27 = vshrl.u32 %v16, 16
    %v29 = vrot.slane %v27, 4
    %v30 = vshll.u32 %v16, 16
    %v32 = vrot.slane %v30, 5
    %v33 = vor.u32 %v29, %v32
    %v34 = vrot.slane %v33, 4
    %v36 = vshll.u32 %v17, 16
    %v38 = vrot.slane %v36, 5
    %v39 = vsel %vm25, %v34, %v38
    %v40 = vshrl.u32 %v17, 16
    %v42 = vrot.slane %v40, 4
    %v43 = vor.u32 %v42, %v38
    %v44 = vrot.slane %v43, 4
    %v46 = vshll.u32 %v18, 16
    %v48 = vrot.slane %v46, 5
    %v49 = vsel %vm25, %v44, %v48
    %v51 = vshrl.u32 %v19, 16
    %v53 = vrot.slane %v51, 4
    %v54 = vshll.u32 %v19, 16
    %v56 = vrot.slane %v54, 5
    %v57 = vor.u32 %v53, %v56
    %v58 = vrot.slane %v57, 4
    %v60 = vshll.u32 %v20, 16
    %v62 = vrot.slane %v60, 5
    %v63 = vsel %vm25, %v58, %v62
    %v64 = vshrl.u32 %v20, 16
    %v66 = vrot.slane %v64, 4
    %v67 = vor.u32 %v66, %v62
    %v68 = vrot.slane %v67, 4
    %v70 = vshll.u32 %v21, 16
    %v72 = vrot.slane %v70, 5
    %v73 = vsel %vm25, %v68, %v72
    %s74 = scalar_lea.vmem %s1, 2
    %v75 = vld [vmem:[%s74] sm:$0x3]
    %v76 = vunpack.c.l.b16 %v39
    %v77 = vunpack.c.l.b16 %v49
    %v78 = vunpack.c.l.b16 %v63
    %v79 = vunpack.c.l.b16 %v73
    %v80 = vpack.c.b16 %v77, %v76
    %v81 = vpack.c.b16 %v79, %v78
    %vm82 = vcmask 31744
    %v84 = vsel %vm82, %v80, 0
    %v87 = vsel %vm82, %v81, 0
    %vm89 = vcmask 1041408
    %v91 = vsel %vm89, %v75, 0
    %93 = vmatprep.subr.bf16.mxu0 0
    %94 = vmatpush1.bf16.msra.mxu0 %v91
    %95 = vmatprep.subr.bf16.mxu0 0
    %96 = vmatpush1.bf16.msra.mxu0 0
    %97 = vmatprep.subr.bf16.mxu0 0
    %98 = vmatpush1.bf16.msra.mxu0 0
    %99 = vmatprep.subr.bf16.mxu0 0
    %100 = vmatpush1.bf16.msra.mxu0 0
    %101 = vmatprep.subr.bf16.mxu0 0
    %102 = vmatpush1.bf16.msra.mxu0 0
    %103 = vmatprep.subr.bf16.mxu0 0
    %104 = vmatpush1.bf16.msra.mxu0 0
    %105 = vmatprep.subr.bf16.mxu0 0
    %106 = vmatpush1.bf16.msra.mxu0 0
    %107 = vmatprep.subr.bf16.mxu0 0
    %108 = vmatpush1.bf16.msra.mxu0 0
    %109 = vmatprep.subr.bf16.mxu0 0
    %110 = vmatpush1.bf16.msra.mxu0 0
    %111 = vmatprep.subr.bf16.mxu0 0
    %112 = vmatpush1.bf16.msra.mxu0 0
    %113 = vmatprep.subr.bf16.mxu0 0
    %114 = vmatpush1.bf16.msra.mxu0 0
    %115 = vmatprep.subr.bf16.mxu0 0
    %116 = vmatpush1.bf16.msra.mxu0 0
    %117 = vmatprep.subr.bf16.mxu0 0
    %118 = vmatpush1.bf16.msra.mxu0 0
    %119 = vmatprep.subr.bf16.mxu0 0
    %120 = vmatpush1.bf16.msra.mxu0 0
    %121 = vmatprep.subr.bf16.mxu0 0
    %122 = vmatpush1.bf16.msra.mxu0 0
    %123 = vmatprep.subr.bf16.mxu0 0
    %124 = vmatpush1.bf16.msra.mxu0 0
    %125 = vmatprep.mubr.bf16.mxu0 0
    %126 = vmatmul.mubr.bf16.gmra.mrb[0].mxu0 %v84
    %v127 = vpop.f32.mrb[0].mxu0
    %v128 = vadd.f32 0.0, %v127
    %v129 = vpop.f32.mrb[0].mxu0
    %v130 = vpop.f32.mrb[0].mxu0
    %v131 = vadd.f32 0.0, %v130
    %v132 = vpop.f32.mrb[0].mxu0
    %133 = vmatprep.mubr.bf16.mxu0 0
    %134 = vmatmul.mubr.bf16.gmra.mrb[0].mxu0 %v87
    %v135 = vpop.f32.mrb[0].mxu0
    %v136 = vadd.f32 0.0, %v135
    %v137 = vpop.f32.mrb[0].mxu0
    %v138 = vpop.f32.mrb[0].mxu0
    %v139 = vadd.f32 0.0, %v138
    %v140 = vpop.f32.mrb[0].mxu0
    %141 = vdwg.mxu0
    %v146 = vunpack.c.l.b16 %v16
    %v147 = vunpack.c.l.b16 %v17
    %v148 = vunpack.c.l.b16 %v19
    %v149 = vunpack.c.l.b16 %v20
    %v150 = vpack.c.b16 %v147, %v146
    %v151 = vpack.c.b16 %v149, %v148
    %v153 = vsel %vm82, %v150, 0
    %v156 = vsel %vm82, %v151, 0
    %v159 = vsel %vm89, %v22, 0
    %161 = vmatprep.subr.bf16.mxu0 0
    %162 = vmatpush1.bf16.msra.mxu0 %v159
    %163 = vmatprep.subr.bf16.mxu0 0
    %164 = vmatpush1.bf16.msra.mxu0 0
    %165 = vmatprep.subr.bf16.mxu0 0
    %166 = vmatpush1.bf16.msra.mxu0 0
    %167 = vmatprep.subr.bf16.mxu0 0
    %168 = vmatpush1.bf16.msra.mxu0 0
    %169 = vmatprep.subr.bf16.mxu0 0
    %170 = vmatpush1.bf16.msra.mxu0 0
    %171 = vmatprep.subr.bf16.mxu0 0
    %172 = vmatpush1.bf16.msra.mxu0 0
    %173 = vmatprep.subr.bf16.mxu0 0
    %174 = vmatpush1.bf16.msra.mxu0 0
    %175 = vmatprep.subr.bf16.mxu0 0
    %176 = vmatpush1.bf16.msra.mxu0 0
    %177 = vmatprep.subr.bf16.mxu0 0
    %178 = vmatpush1.bf16.msra.mxu0 0
    %179 = vmatprep.subr.bf16.mxu0 0
    %180 = vmatpush1.bf16.msra.mxu0 0
    %181 = vmatprep.subr.bf16.mxu0 0
    %182 = vmatpush1.bf16.msra.mxu0 0
    %183 = vmatprep.subr.bf16.mxu0 0
    %184 = vmatpush1.bf16.msra.mxu0 0
    %185 = vmatprep.subr.bf16.mxu0 0
    %186 = vmatpush1.bf16.msra.mxu0 0
    %187 = vmatprep.subr.bf16.mxu0 0
    %188 = vmatpush1.bf16.msra.mxu0 0
    %189 = vmatprep.subr.bf16.mxu0 0
    %190 = vmatpush1.bf16.msra.mxu0 0
    %191 = vmatprep.subr.bf16.mxu0 0
    %192 = vmatpush1.bf16.msra.mxu0 0
    %193 = vmatprep.mubr.bf16.mxu0 0
    %194 = vmatmul.mubr.bf16.gmra.mrb[0].mxu0 %v153
    %v195 = vpop.f32.mrb[0].mxu0
    %v196 = vadd.f32 %v128, %v195
    %v197 = vpop.f32.mrb[0].mxu0
    %v198 = vpop.f32.mrb[0].mxu0
    %v199 = vadd.f32 %v131, %v198
    %v200 = vpop.f32.mrb[0].mxu0
    %201 = vmatprep.mubr.bf16.mxu0 0
    %202 = vmatmul.mubr.bf16.gmra.mrb[0].mxu0 %v156
    %v203 = vpop.f32.mrb[0].mxu0
    %v204 = vadd.f32 %v136, %v203
    %v205 = vpop.f32.mrb[0].mxu0
    %v206 = vpop.f32.mrb[0].mxu0
    %v207 = vadd.f32 %v139, %v206
    %v208 = vpop.f32.mrb[0].mxu0
    %209 = vdwg.mxu0
    %vm212 = vcmask 1042432
    %vm213 = vcmask 1046532
    %vm214 = vmor %vm212, %vm213
    %v215 = vrot.slane %v16, 5
    %v216 = vrot.slane %v215, 4
    %v217 = vrot.slane %v17, 5
    %v218 = vsel %vm214, %v216, %v217
    %v219 = vrot.slane %v217, 4
    %v220 = vrot.slane %v18, 5
    %v221 = vsel %vm214, %v219, %v220
    %v222 = vrot.slane %v19, 5
    %v223 = vrot.slane %v222, 4
    %v224 = vrot.slane %v20, 5
    %v225 = vsel %vm214, %v223, %v224
    %v226 = vrot.slane %v224, 4
    %v227 = vrot.slane %v21, 5
    %v228 = vsel %vm214, %v226, %v227
    %s229 = scalar_lea.vmem %s1, 4
    %v230 = vld [vmem:[%s229] sm:$0x3]
    %v231 = vunpack.c.l.b16 %v218
    %v232 = vunpack.c.l.b16 %v221
    %v233 = vunpack.c.l.b16 %v225
    %v234 = vunpack.c.l.b16 %v228
    %v235 = vpack.c.b16 %v232, %v231
    %v236 = vpack.c.b16 %v234, %v233
    %v238 = vsel %vm82, %v235, 0
    %v241 = vsel %vm82, %v236, 0
    %v244 = vsel %vm89, %v230, 0
    %246 = vmatprep.subr.bf16.mxu0 0
    %247 = vmatpush1.bf16.msra.mxu0 %v244
    %248 = vmatprep.subr.bf16.mxu0 0
    %249 = vmatpush1.bf16.msra.mxu0 0
    %250 = vmatprep.subr.bf16.mxu0 0
    %251 = vmatpush1.bf16.msra.mxu0 0
    %252 = vmatprep.subr.bf16.mxu0 0
    %253 = vmatpush1.bf16.msra.mxu0 0
    %254 = vmatprep.subr.bf16.mxu0 0
    %255 = vmatpush1.bf16.msra.mxu0 0
    %256 = vmatprep.subr.bf16.mxu0 0
    %257 = vmatpush1.bf16.msra.mxu0 0
    %258 = vmatprep.subr.bf16.mxu0 0
    %259 = vmatpush1.bf16.msra.mxu0 0
    %260 = vmatprep.subr.bf16.mxu0 0
    %261 = vmatpush1.bf16.msra.mxu0 0
    %262 = vmatprep.subr.bf16.mxu0 0
    %263 = vmatpush1.bf16.msra.mxu0 0
    %264 = vmatprep.subr.bf16.mxu0 0
    %265 = vmatpush1.bf16.msra.mxu0 0
    %266 = vmatprep.subr.bf16.mxu0 0
    %267 = vmatpush1.bf16.msra.mxu0 0
    %268 = vmatprep.subr.bf16.mxu0 0
    %269 = vmatpush1.bf16.msra.mxu0 0
    %270 = vmatprep.subr.bf16.mxu0 0
    %271 = vmatpush1.bf16.msra.mxu0 0
    %272 = vmatprep.subr.bf16.mxu0 0
    %273 = vmatpush1.bf16.msra.mxu0 0
    %274 = vmatprep.subr.bf16.mxu0 0
    %275 = vmatpush1.bf16.msra.mxu0 0
    %276 = vmatprep.subr.bf16.mxu0 0
    %277 = vmatpush1.bf16.msra.mxu0 0
    %278 = vmatprep.mubr.bf16.mxu0 0
    %279 = vmatmul.mubr.bf16.gmra.mrb[0].mxu0 %v238
    %v280 = vpop.f32.mrb[0].mxu0
    %v281 = vadd.f32 0.0, %v280
    %v282 = vpop.f32.mrb[0].mxu0
    %v283 = vpop.f32.mrb[0].mxu0
    %v284 = vadd.f32 0.0, %v283
    %v285 = vpop.f32.mrb[0].mxu0
    %286 = vmatprep.mubr.bf16.mxu0 0
    %287 = vmatmul.mubr.bf16.gmra.mrb[0].mxu0 %v241
    %v288 = vpop.f32.mrb[0].mxu0
    %v289 = vadd.f32 0.0, %v288
    %v290 = vpop.f32.mrb[0].mxu0
    %v291 = vpop.f32.mrb[0].mxu0
    %v292 = vadd.f32 0.0, %v291
    %v293 = vpop.f32.mrb[0].mxu0
    %294 = vdwg.mxu0
    %v295 = vadd.f32 %v196, %v281
    %v296 = vadd.f32 %v199, %v284
    %v297 = vadd.f32 %v204, %v289
    %v298 = vadd.f32 %v207, %v292
    %vm299 = vsmask.f32 2304
    %vm300 = vsmask.f32 6416
    %vm301 = vmor %vm299, %vm300
    %v302 = vrot.slane %v27, 5
    %v303 = vrot.slane %v30, 6
    %v304 = vor.u32 %v302, %v303
    %v305 = vrot.slane %v304, 4
    %v306 = vrot.slane %v40, 5
    %v307 = vrot.slane %v36, 6
    %v308 = vor.u32 %v306, %v307
    %v309 = vsel %vm301, %v305, %v308
    %v310 = vrot.slane %v308, 4
    %v311 = vshrl.u32 %v18, 16
    %v313 = vrot.slane %v311, 5
    %v314 = vrot.slane %v46, 6
    %v315 = vor.u32 %v313, %v314
    %v316 = vsel %vm301, %v310, %v315
    %v317 = vrot.slane %v51, 5
    %v318 = vrot.slane %v54, 6
    %v319 = vor.u32 %v317, %v318
    %v320 = vrot.slane %v319, 4
    %v321 = vrot.slane %v64, 5
    %v322 = vrot.slane %v60, 6
    %v323 = vor.u32 %v321, %v322
    %v324 = vsel %vm301, %v320, %v323
    %v325 = vrot.slane %v323, 4
    %v326 = vshrl.u32 %v21, 16
    %v328 = vrot.slane %v326, 5
    %v329 = vrot.slane %v70, 6
    %v330 = vor.u32 %v328, %v329
    %v331 = vsel %vm301, %v325, %v330
    %s332 = scalar_lea.vmem %s1, 6
    %v333 = vld [vmem:[%s332] sm:$0x3]
    %v334 = vunpack.c.l.b16 %v309
    %v335 = vunpack.c.l.b16 %v316
    %v336 = vunpack.c.l.b16 %v324
    %v337 = vunpack.c.l.b16 %v331
    %v338 = vpack.c.b16 %v335, %v334
    %v339 = vpack.c.b16 %v337, %v336
    %v341 = vsel %vm82, %v338, 0
    %v344 = vsel %vm82, %v339, 0
    %v347 = vsel %vm89, %v333, 0
    %349 = vmatprep.subr.bf16.mxu0 0
    %350 = vmatpush1.bf16.msra.mxu0 %v347
    %351 = vmatprep.subr.bf16.mxu0 0
    %352 = vmatpush1.bf16.msra.mxu0 0
    %353 = vmatprep.subr.bf16.mxu0 0
    %354 = vmatpush1.bf16.msra.mxu0 0
    %355 = vmatprep.subr.bf16.mxu0 0
    %356 = vmatpush1.bf16.msra.mxu0 0
    %357 = vmatprep.subr.bf16.mxu0 0
    %358 = vmatpush1.bf16.msra.mxu0 0
    %359 = vmatprep.subr.bf16.mxu0 0
    %360 = vmatpush1.bf16.msra.mxu0 0
    %361 = vmatprep.subr.bf16.mxu0 0
    %362 = vmatpush1.bf16.msra.mxu0 0
    %363 = vmatprep.subr.bf16.mxu0 0
    %364 = vmatpush1.bf16.msra.mxu0 0
    %365 = vmatprep.subr.bf16.mxu0 0
    %366 = vmatpush1.bf16.msra.mxu0 0
    %367 = vmatprep.subr.bf16.mxu0 0
    %368 = vmatpush1.bf16.msra.mxu0 0
    %369 = vmatprep.subr.bf16.mxu0 0
    %370 = vmatpush1.bf16.msra.mxu0 0
    %371 = vmatprep.subr.bf16.mxu0 0
    %372 = vmatpush1.bf16.msra.mxu0 0
    %373 = vmatprep.subr.bf16.mxu0 0
    %374 = vmatpush1.bf16.msra.mxu0 0
    %375 = vmatprep.subr.bf16.mxu0 0
    %376 = vmatpush1.bf16.msra.mxu0 0
    %377 = vmatprep.subr.bf16.mxu0 0
    %378 = vmatpush1.bf16.msra.mxu0 0
    %379 = vmatprep.subr.bf16.mxu0 0
    %380 = vmatpush1.bf16.msra.mxu0 0
    %381 = vmatprep.mubr.bf16.mxu0 0
    %382 = vmatmul.mubr.bf16.gmra.mrb[0].mxu0 %v341
    %v383 = vpop.f32.mrb[0].mxu0
    %v384 = vadd.f32 0.0, %v383
    %v385 = vpop.f32.mrb[0].mxu0
    %v386 = vpop.f32.mrb[0].mxu0
    %v387 = vadd.f32 0.0, %v386
    %v388 = vpop.f32.mrb[0].mxu0
    %389 = vmatprep.mubr.bf16.mxu0 0
    %390 = vmatmul.mubr.bf16.gmra.mrb[0].mxu0 %v344
    %v391 = vpop.f32.mrb[0].mxu0
    %v392 = vadd.f32 0.0, %v391
    %v393 = vpop.f32.mrb[0].mxu0
    %v394 = vpop.f32.mrb[0].mxu0
    %v395 = vadd.f32 0.0, %v394
    %v396 = vpop.f32.mrb[0].mxu0
    %397 = vdwg.mxu0
    %v398 = vadd.f32 %v295, %v384
    %v399 = vadd.f32 %v296, %v387
    %v400 = vadd.f32 %v297, %v392
    %v401 = vadd.f32 %v298, %v395
    %vm402 = vcmask 1041408
    %vm403 = vcmask 1045508
    %vm404 = vmor %vm402, %vm403
    %v405 = vrot.slane %v16, 6
    %v406 = vrot.slane %v405, 4
    %v407 = vrot.slane %v17, 6
    %v408 = vsel %vm404, %v406, %v407
    %v409 = vrot.slane %v407, 4
    %v410 = vrot.slane %v18, 6
    %v411 = vsel %vm404, %v409, %v410
    %v412 = vrot.slane %v19, 6
    %v413 = vrot.slane %v412, 4
    %v414 = vrot.slane %v20, 6
    %v415 = vsel %vm404, %v413, %v414
    %v416 = vrot.slane %v414, 4
    %v417 = vrot.slane %v21, 6
    %v418 = vsel %vm404, %v416, %v417
    %s419 = scalar_lea.vmem %s1, 8
    %v420 = vld [vmem:[%s419] sm:$0x3]
    %v421 = vunpack.c.l.b16 %v408
    %v422 = vunpack.c.l.b16 %v411
    %v423 = vunpack.c.l.b16 %v415
    %v424 = vunpack.c.l.b16 %v418
    %v425 = vpack.c.b16 %v422, %v421
    %v426 = vpack.c.b16 %v424, %v423
    %v428 = vsel %vm82, %v425, 0
    %v431 = vsel %vm82, %v426, 0
    %v434 = vsel %vm89, %v420, 0
    %436 = vmatprep.subr.bf16.mxu0 0
    %437 = vmatpush1.bf16.msra.mxu0 %v434
    %438 = vmatprep.subr.bf16.mxu0 0
    %439 = vmatpush1.bf16.msra.mxu0 0
    %440 = vmatprep.subr.bf16.mxu0 0
    %441 = vmatpush1.bf16.msra.mxu0 0
    %442 = vmatprep.subr.bf16.mxu0 0
    %443 = vmatpush1.bf16.msra.mxu0 0
    %444 = vmatprep.subr.bf16.mxu0 0
    %445 = vmatpush1.bf16.msra.mxu0 0
    %446 = vmatprep.subr.bf16.mxu0 0
    %447 = vmatpush1.bf16.msra.mxu0 0
    %448 = vmatprep.subr.bf16.mxu0 0
    %449 = vmatpush1.bf16.msra.mxu0 0
    %450 = vmatprep.subr.bf16.mxu0 0
    %451 = vmatpush1.bf16.msra.mxu0 0
    %452 = vmatprep.subr.bf16.mxu0 0
    %453 = vmatpush1.bf16.msra.mxu0 0
    %454 = vmatprep.subr.bf16.mxu0 0
    %455 = vmatpush1.bf16.msra.mxu0 0
    %456 = vmatprep.subr.bf16.mxu0 0
    %457 = vmatpush1.bf16.msra.mxu0 0
    %458 = vmatprep.subr.bf16.mxu0 0
    %459 = vmatpush1.bf16.msra.mxu0 0
    %460 = vmatprep.subr.bf16.mxu0 0
    %461 = vmatpush1.bf16.msra.mxu0 0
    %462 = vmatprep.subr.bf16.mxu0 0
    %463 = vmatpush1.bf16.msra.mxu0 0
    %464 = vmatprep.subr.bf16.mxu0 0
    %465 = vmatpush1.bf16.msra.mxu0 0
    %466 = vmatprep.subr.bf16.mxu0 0
    %467 = vmatpush1.bf16.msra.mxu0 0
    %468 = vmatprep.mubr.bf16.mxu0 0
    %469 = vmatmul.mubr.bf16.gmra.mrb[0].mxu0 %v428
    %v470 = vpop.f32.mrb[0].mxu0
    %v471 = vadd.f32 0.0, %v470
    %v472 = vpop.f32.mrb[0].mxu0
    %v473 = vpop.f32.mrb[0].mxu0
    %v474 = vadd.f32 0.0, %v473
    %v475 = vpop.f32.mrb[0].mxu0
    %476 = vmatprep.mubr.bf16.mxu0 0
    %477 = vmatmul.mubr.bf16.gmra.mrb[0].mxu0 %v431
    %v478 = vpop.f32.mrb[0].mxu0
    %v479 = vadd.f32 0.0, %v478
    %v480 = vpop.f32.mrb[0].mxu0
    %v481 = vpop.f32.mrb[0].mxu0
    %v482 = vadd.f32 0.0, %v481
    %v483 = vpop.f32.mrb[0].mxu0
    %484 = vdwg.mxu0
    %v485 = vadd.f32 %v398, %v471
    %v486 = vadd.f32 %v399, %v474
    %v487 = vadd.f32 %v400, %v479
    %v488 = vadd.f32 %v401, %v482
    %v489 = vlaneseq
    %v490 = vshrl.u32 %v489, 7
    %v491 = vadd.s32 %v490, 8
    %vm492 = vcmp.lt.s32.totalorder %v490, 14
    %vm493 = vcmp.lt.s32.totalorder %v491, 14
    %v494 = vsel %vm492, 1, 0
    %v495 = vsel %vm493, 1, 0
    %vm496 = vcmp.eq.s32.totalorder %v494, 1
    %vm497 = vcmp.eq.s32.totalorder %v495, 1
    %v498 = vsel %vm496, %v485, -inf
    %v499 = vsel %vm497, %v486, -inf
    %v500 = vsel %vm496, %v487, -inf
    %v501 = vsel %vm497, %v488, -inf
    %v502 = vmax.f32 %v498, %v499
    %v503 = vrot.slane %v502, 4
    %v504 = vmax.f32 %v502, %v503
    %v505 = vrot.slane %v504, 2
    %v506 = vmax.f32 %v504, %v505
    %v507 = vrot.slane %v506, 1
    %v508 = vmax.f32 %v506, %v507
    %v509 = vmax.f32 %v500, %v501
    %v510 = vrot.slane %v509, 4
    %v511 = vmax.f32 %v509, %v510
    %v512 = vrot.slane %v511, 2
    %v513 = vmax.f32 %v511, %v512
    %v514 = vrot.slane %v513, 1
    %v515 = vmax.f32 %v513, %v514
    %v516 = vld [vmem:[%s2] sm:$0x1]
    %v518 = vlaneseq
    %v519 = vshrl.u32 %v518, 7
    %v520 = vsub.s32 0, %v519
    %v521 = vrot.slane %v516, %v520
    %v523 = vadd.f32 %v508, %v521
    %v524 = vadd.f32 %v515, %v521
    %v525 = vmax.f32 %v523, 0.0
    %v526 = vmax.f32 %v524, 0.0
    %v529 = vrot.slane %v526, 7
    %vm530 = vcmask 1041409
    %v531 = vsel %vm530, %v529, %v525
    %533 = vst [vmem:[#allocation2] sm:$0x3] %v531
    // Predicated region
    $region14: #{tpu_custom_call.1} parent=1 // pred_check
      _
    $region15: #{tpu_custom_call.1} parent=1 // pred_check_branch
      %535 = sbr.rel (0) target = $region17
    $region16: #{tpu_custom_call.1} parent=1 // pred_region
      %s537 = ssub.s32 32, 32
      %538 = vsyncadd [#allocation3], %s537
      %s540 = sshll.u32 [#allocation2], 4
      %s541 = int_to_ptr.vmem [resolvable:$true] %s540
      %543 = dma.vmem_to_hbm [thread:$0]  %s541, 32, %s3, [#allocation3]
    $region17: #{tpu_custom_call.1} parent=1 // pred_fallthru
      _
    // Predicated region
    $region18: #{tpu_custom_call.1} parent=1 // pred_check
      _
    $region19: #{tpu_custom_call.1} parent=1 // pred_check_branch
      %545 = sbr.rel (0) target = $region21
    $region20: #{tpu_custom_call.1} parent=1 // pred_region
      %546 = dma.done [#allocation3], 32
    $region21: #{tpu_custom_call.1} parent=1 // pred_fallthru
      _
    %547 = vsyncpa [#allocation3], 1

</llo_original>
